<compile_context>
chip_gen: v5e
topology: v5e:2x2
jax: 0.10.0
libtpu: 0.0.40
codegen_flags: <defaults>
</compile_context>

<pallas_src>
import functools

import jax
import jax.numpy as jnp
from jax import lax
from jax.experimental import pallas as pl
from jax.experimental.pallas import tpu as pltpu

# torchvision Grayscale / rgb_to_grayscale weights, applied in channel-index
# order (this faithfully matches the PyTorch module even though the channels
# are named BGR there).
_GS_W0 = 0.2989
_GS_W1 = 0.587
_GS_W2 = 0.114
_EPS = 1e-6


def _round_up(a: int, b: int) -> int:
    return ((a + b - 1) // b) * b


def _vmem_limit(block_bytes: int) -> int:
    # explicit scoped-VMEM budget: ~3x the block working set + headroom,
    # floored at 4 MiB, capped at the v7x-safe 64 MiB.
    return int(max(4 << 20, min(64 << 20, 3 * block_bytes + (2 << 20))))


# ---------------------------------------------------------------------------
# Path A: fused single-pass kernel (whole images per grid step, batch-tiled).
# ---------------------------------------------------------------------------
def _fused_kernel(x_ref, m_ref, o_ref, *, bf):
    xr = x_ref[...]                              # (B, 4, HW) raw (pass-through)
    x = xr.astype(jnp.float32)
    m = m_ref[...].astype(jnp.float32)           # (B, 1, HW)

    gs = _GS_W0 * x[:, 0, :] + _GS_W1 * x[:, 1, :] + _GS_W2 * x[:, 2, :]
    diff = jnp.maximum(gs - x[:, 3, :], 0.0)     # (B, HW)

    dmin = jnp.min(diff, axis=-1, keepdims=True)  # (B, 1) per-image
    dmax = jnp.max(diff, axis=-1, keepdims=True)
    scale = bf / (dmax - dmin + _EPS)             # per-image scalar

    adj = jnp.clip(m[:, 0, :] + scale * (diff - dmin), 0.0, 1.0)

    # pass-through channels as one slab store, new channel separately.
    o_ref[:, 0:4, :] = xr.astype(o_ref.dtype)
    o_ref[:, 4:5, :] = adj[:, None, :].astype(o_ref.dtype)


def _run_fused(xf, mf, bf, vmem_budget_bytes):
    N, _, HW = xf.shape
    itemsize = jnp.dtype(xf.dtype).itemsize
    # double-buffered (4 in + 1 mask + 5 out) planes per image
    per_image = 2 * (4 + 1 + 5) * HW * itemsize
    max_tile = max(1, vmem_budget_bytes // per_image)
    b_tile = 1
    for d in range(1, N + 1):                    # largest divisor of N <= max_tile
        if N % d == 0 and d <= max_tile:
            b_tile = d

    block_bytes = (4 + 1 + 5) * b_tile * HW * itemsize
    kernel = functools.partial(_fused_kernel, bf=bf)

    return pl.pallas_call(
        kernel,
        out_shape=jax.ShapeDtypeStruct((N, 5, HW), xf.dtype),
        grid=(N // b_tile,),
        in_specs=[
            pl.BlockSpec((b_tile, 4, HW), lambda n: (n, 0, 0)),
            pl.BlockSpec((b_tile, 1, HW), lambda n: (n, 0, 0)),
        ],
        out_specs=pl.BlockSpec((b_tile, 5, HW), lambda n: (n, 0, 0)),
        compiler_params=pltpu.CompilerParams(
            dimension_semantics=("parallel",),
            vmem_limit_bytes=_vmem_limit(block_bytes)),
    )(xf, mf)


# ---------------------------------------------------------------------------
# Path B: spatially tiled two-pass (stats then apply) for large images.
# ---------------------------------------------------------------------------
def _stats_kernel(x_ref, dmin_ref, dmax_ref, *, hw, s_tile):
    s = pl.program_id(0)
    x = x_ref[...].astype(jnp.float32)           # (N, 4, S_TILE)

    gs = _GS_W0 * x[:, 0, :] + _GS_W1 * x[:, 1, :] + _GS_W2 * x[:, 2, :]
    diff = jnp.maximum(gs - x[:, 3, :], 0.0)     # (N, S_TILE)

    # mask the padded lanes of a possibly-partial last spatial tile
    lane = lax.broadcasted_iota(jnp.int32, diff.shape, 1)
    valid = (s * s_tile + lane) < hw
    tmin = jnp.min(jnp.where(valid, diff, jnp.inf), axis=-1, keepdims=True)
    tmax = jnp.max(jnp.where(valid, diff, -jnp.inf), axis=-1, keepdims=True)

    @pl.when(s == 0)
    def _():
        dmin_ref[...] = jnp.broadcast_to(tmin, dmin_ref.shape)
        dmax_ref[...] = jnp.broadcast_to(tmax, dmax_ref.shape)

    @pl.when(s != 0)
    def _():
        dmin_ref[...] = jnp.minimum(dmin_ref[...], tmin)
        dmax_ref[...] = jnp.maximum(dmax_ref[...], tmax)


def _apply_kernel(x_ref, m_ref, dmin_ref, dmax_ref, o_ref, *, bf):
    xr = x_ref[...]                              # (N, 4, S_TILE)
    x = xr.astype(jnp.float32)
    m = m_ref[...].astype(jnp.float32)           # (N, 1, S_TILE)

    gs = _GS_W0 * x[:, 0, :] + _GS_W1 * x[:, 1, :] + _GS_W2 * x[:, 2, :]
    diff = jnp.maximum(gs - x[:, 3, :], 0.0)     # (N, S_TILE)

    dmin = dmin_ref[...][:, 0:1]                 # (N, 1)
    dmax = dmax_ref[...][:, 0:1]
    scale = bf / (dmax - dmin + _EPS)

    adj = jnp.clip(m[:, 0, :] + scale * (diff - dmin), 0.0, 1.0)

    o_ref[:, 0:4, :] = xr.astype(o_ref.dtype)
    o_ref[:, 4:5, :] = adj[:, None, :].astype(o_ref.dtype)


def _run_two_pass(xf, mf, bf, vmem_budget_bytes, spatial_tile):
    N, _, HW = xf.shape
    itemsize = jnp.dtype(xf.dtype).itemsize

    if spatial_tile is None:
        # apply pass moves (4 in + 1 mask + 5 out) * N values per spatial
        # element, double-buffered; keep the lane tile a multiple of 128.
        per_lane = 2 * (4 + 1 + 5) * N * itemsize
        spatial_tile = max(128, (vmem_budget_bytes // per_lane) // 128 * 128)
    spatial_tile = max(128, _round_up(int(spatial_tile), 128))
    spatial_tile = min(spatial_tile, _round_up(HW, 128))
    n_tiles = pl.cdiv(HW, spatial_tile)

    # ---- pass 1: per-image min/max of relu(gray - event) ----
    stats_block = N * 4 * spatial_tile * itemsize
    stats_kernel = functools.partial(_stats_kernel, hw=HW, s_tile=spatial_tile)
    dmin, dmax = pl.pallas_call(
        stats_kernel,
        out_shape=(jax.ShapeDtypeStruct((N, 128), jnp.float32),
                   jax.ShapeDtypeStruct((N, 128), jnp.float32)),
        grid=(n_tiles,),
        in_specs=[pl.BlockSpec((N, 4, spatial_tile), lambda s: (0, 0, s))],
        out_specs=(pl.BlockSpec((N, 128), lambda s: (0, 0)),
                   pl.BlockSpec((N, 128), lambda s: (0, 0))),
        compiler_params=pltpu.CompilerParams(
            dimension_semantics=("arbitrary",),
            vmem_limit_bytes=_vmem_limit(stats_block)),
    )(xf)

    # ---- pass 2: normalize, blend, clamp, write 5 channels ----
    apply_block = (4 + 1 + 5) * N * spatial_tile * itemsize + 2 * N * 128 * 4
    apply_kernel = functools.partial(_apply_kernel, bf=bf)
    out = pl.pallas_call(
        apply_kernel,
        out_shape=jax.ShapeDtypeStruct((N, 5, HW), xf.dtype),
        grid=(n_tiles,),
        in_specs=[
            pl.BlockSpec((N, 4, spatial_tile), lambda s: (0, 0, s)),
            pl.BlockSpec((N, 1, spatial_tile), lambda s: (0, 0, s)),
            pl.BlockSpec((N, 128), lambda s: (0, 0)),
            pl.BlockSpec((N, 128), lambda s: (0, 0)),
        ],
        out_specs=pl.BlockSpec((N, 5, spatial_tile), lambda s: (0, 0, s)),
        compiler_params=pltpu.CompilerParams(
            dimension_semantics=("parallel",),
            vmem_limit_bytes=_vmem_limit(apply_block)),
    )(xf, mf, dmin, dmax)
    return out


# ---------------------------------------------------------------------------
# Public wrapper
# ---------------------------------------------------------------------------
def event_considering_combiner(x: jax.Array,
                               artifact_map: jax.Array,
                               blending_factor: float = 0.5,
                               *,
                               vmem_budget_bytes: int = 16 << 20,
                               spatial_tile: int | None = None,
                               force_two_pass: bool = False) -> jax.Array:
    """x: (N, >=4, H, W), artifact_map: (N, 1, H, W). Returns (N, 5, H, W)."""
    N, C, H, W = x.shape
    assert C >= 4, "x must have at least 4 channels (3 image + 1 event)"
    assert artifact_map.shape == (N, 1, H, W)
    HW = H * W
    bf = float(blending_factor)  # plain Python float -> no captured constant

    # TODO(synk): for C > 4 this slice costs an extra HBM pass over x; the
    # module contract is exactly 4 channels, in which case no copy happens.
    x4 = x if C == 4 else x[:, :4, :, :]

    # Lane-dense layout: flatten spatial dims onto the lane axis (free reshape).
    xf = x4.reshape(N, 4, HW)
    mf = artifact_map.reshape(N, 1, HW)

    itemsize = jnp.dtype(x.dtype).itemsize
    per_image = 2 * (4 + 1 + 5) * HW * itemsize  # double-buffered planes
    fits_whole_image = per_image <= vmem_budget_bytes

    if fits_whole_image and not force_two_pass:
        out = _run_fused(xf, mf, bf, vmem_budget_bytes)
    else:
        out = _run_two_pass(xf, mf, bf, vmem_budget_bytes, spatial_tile)

    return out.reshape(N, 5, H, W)


def _reference(x, artifact_map, blending_factor=0.5):
    """Pure-JAX reference matching the PyTorch forward."""
    bgr = x[:, :3]
    ev = x[:, 3:4]
    gs = (_GS_W0 * bgr[:, 0:1] + _GS_W1 * bgr[:, 1:2] + _GS_W2 * bgr[:, 2:3])
    diff = jnp.maximum(gs - ev, 0.0)
    dmin = jnp.min(diff, axis=(2, 3), keepdims=True)
    dmax = jnp.max(diff, axis=(2, 3), keepdims=True)
    diff = (diff - dmin) / (dmax - dmin + 1e-6)
    adj = jnp.clip(artifact_map + blending_factor * diff, 0.0, 1.0)
    return jnp.concatenate([bgr, ev, adj], axis=1)


if __name__ == "__main__":
    key = jax.random.PRNGKey(0)
    kx, km = jax.random.split(key)

    N, C, H, W = 2, 4, 16, 16
    x = jax.random.uniform(kx, (N, C, H, W), dtype=jnp.float32)
    artifact_map = jax.random.uniform(km, (N, 1, H, W), dtype=jnp.float32)

    ref = _reference(x, artifact_map, blending_factor=0.5)

    # Path A: fused single-pass kernel (whole images fit in VMEM).
    out = event_considering_combiner(x, artifact_map, blending_factor=0.5)
    out = jax.block_until_ready(out)
    assert out.shape == (N, 5, H, W)
    assert jnp.allclose(out, ref, atol=1e-5, rtol=1e-5), "fused path mismatch"

    # Path B: spatially tiled two-pass (used for large images); force it here
    # with a 128-lane tile so the cross-tile min/max accumulation is exercised.
    out2 = event_considering_combiner(x, artifact_map, blending_factor=0.5,
                                      force_two_pass=True, spatial_tile=128)
    out2 = jax.block_until_ready(out2)
    assert jnp.allclose(out2, ref, atol=1e-5, rtol=1e-5), "two-pass mismatch"

    print("KERNEL_OK")
</pallas_src>

<mosaic_0001>
module attributes {stable_mosaic.version = 11 : i64} {
  func.func @_fused_kernel(%arg0: i32, %arg1: memref<2x4x256xf32, #tpu.memory_space<vmem>>, %arg2: memref<2x1x256xf32, #tpu.memory_space<vmem>>, %arg3: memref<2x5x256xf32, #tpu.memory_space<vmem>>) attributes {dimension_semantics = [#tpu.dimension_semantics<parallel>], iteration_bounds = array<i64: 1>, scalar_prefetch = 0 : i64, scratch_operands = 0 : i64, tpu.core_type = #tpu.core_type<tc>, window_params = [{transform_indices = @transform_0, window_bounds = array<i64: 2, 4, 256>}, {transform_indices = @transform_1, window_bounds = array<i64: 2, 1, 256>}, {transform_indices = @transform_2, window_bounds = array<i64: 2, 5, 256>}]} {
    %c0 = arith.constant 0 : index
    %c0_0 = arith.constant 0 : index
    %c0_1 = arith.constant 0 : index
    %0 = vector.load %arg1[%c0, %c0_0, %c0_1] : memref<2x4x256xf32, #tpu.memory_space<vmem>>, vector<2x4x256xf32>
    %c0_2 = arith.constant 0 : index
    %c0_3 = arith.constant 0 : index
    %c0_4 = arith.constant 0 : index
    %1 = vector.load %arg2[%c0_2, %c0_3, %c0_4] : memref<2x1x256xf32, #tpu.memory_space<vmem>>, vector<2x1x256xf32>
    %2 = vector.extract_strided_slice %0 {offsets = [0, 0, 0], sizes = [2, 1, 256], strides = [1, 1, 1]} : vector<2x4x256xf32> to vector<2x1x256xf32>
    %3 = vector.shape_cast %2 : vector<2x1x256xf32> to vector<2x256xf32>
    %cst = arith.constant 2.989000e-01 : f32
    %4 = vector.broadcast %cst : f32 to vector<2x256xf32>
    %5 = arith.mulf %4, %3 : vector<2x256xf32>
    %6 = vector.extract_strided_slice %0 {offsets = [0, 1, 0], sizes = [2, 1, 256], strides = [1, 1, 1]} : vector<2x4x256xf32> to vector<2x1x256xf32>
    %7 = vector.shape_cast %6 : vector<2x1x256xf32> to vector<2x256xf32>
    %cst_5 = arith.constant 5.870000e-01 : f32
    %8 = vector.broadcast %cst_5 : f32 to vector<2x256xf32>
    %9 = arith.mulf %8, %7 : vector<2x256xf32>
    %10 = arith.addf %5, %9 : vector<2x256xf32>
    %11 = vector.extract_strided_slice %0 {offsets = [0, 2, 0], sizes = [2, 1, 256], strides = [1, 1, 1]} : vector<2x4x256xf32> to vector<2x1x256xf32>
    %12 = vector.shape_cast %11 : vector<2x1x256xf32> to vector<2x256xf32>
    %cst_6 = arith.constant 1.140000e-01 : f32
    %13 = vector.broadcast %cst_6 : f32 to vector<2x256xf32>
    %14 = arith.mulf %13, %12 : vector<2x256xf32>
    %15 = arith.addf %10, %14 : vector<2x256xf32>
    %16 = vector.extract_strided_slice %0 {offsets = [0, 3, 0], sizes = [2, 1, 256], strides = [1, 1, 1]} : vector<2x4x256xf32> to vector<2x1x256xf32>
    %17 = vector.shape_cast %16 : vector<2x1x256xf32> to vector<2x256xf32>
    %18 = arith.subf %15, %17 : vector<2x256xf32>
    %cst_7 = arith.constant 0.000000e+00 : f32
    %19 = vector.broadcast %cst_7 : f32 to vector<2x256xf32>
    %20 = arith.maximumf %18, %19 : vector<2x256xf32>
    %cst_8 = arith.constant dense<0x7F800000> : vector<2xf32>
    %21 = vector.multi_reduction <minimumf>, %20, %cst_8 [1] : vector<2x256xf32> to vector<2xf32>
    %22 = vector.shape_cast %21 : vector<2xf32> to vector<2x1xf32>
    %cst_9 = arith.constant dense<0xFF800000> : vector<2xf32>
    %23 = vector.multi_reduction <maximumf>, %20, %cst_9 [1] : vector<2x256xf32> to vector<2xf32>
    %24 = vector.shape_cast %23 : vector<2xf32> to vector<2x1xf32>
    %25 = arith.subf %24, %22 : vector<2x1xf32>
    %cst_10 = arith.constant 9.99999997E-7 : f32
    %26 = vector.broadcast %cst_10 : f32 to vector<2x1xf32>
    %27 = arith.addf %25, %26 : vector<2x1xf32>
    %cst_11 = arith.constant 5.000000e-01 : f32
    %28 = vector.broadcast %cst_11 : f32 to vector<2x1xf32>
    %29 = arith.divf %28, %27 : vector<2x1xf32>
    %30 = vector.shape_cast %1 : vector<2x1x256xf32> to vector<2x256xf32>
    %31 = vector.broadcast %22 : vector<2x1xf32> to vector<2x256xf32>
    %32 = arith.subf %20, %31 : vector<2x256xf32>
    %33 = vector.broadcast %29 : vector<2x1xf32> to vector<2x256xf32>
    %34 = arith.mulf %33, %32 : vector<2x256xf32>
    %35 = arith.addf %30, %34 : vector<2x256xf32>
    %cst_12 = arith.constant 0.000000e+00 : f32
    %cst_13 = arith.constant 1.000000e+00 : f32
    %36 = vector.broadcast %cst_12 : f32 to vector<2x256xf32>
    %37 = arith.maximumf %36, %35 : vector<2x256xf32>
    %38 = vector.broadcast %cst_13 : f32 to vector<2x256xf32>
    %39 = arith.minimumf %38, %37 : vector<2x256xf32>
    %c0_14 = arith.constant 0 : index
    %c0_15 = arith.constant 0 : index
    %c0_16 = arith.constant 0 : index
    %40 = vector.load %arg3[%c0_14, %c0_15, %c0_16] : memref<2x5x256xf32, #tpu.memory_space<vmem>>, vector<2x4x256xf32>
    tpu.vector_store %arg3[%c0_14, %c0_15, %c0_16], %0 {strides = array<i32>} : memref<2x5x256xf32, #tpu.memory_space<vmem>>, vector<2x4x256xf32>,
    %41 = vector.shape_cast %39 : vector<2x256xf32> to vector<2x1x256xf32>
    %c0_17 = arith.constant 0 : index
    %c4 = arith.constant 4 : index
    %c0_18 = arith.constant 0 : index
    %42 = vector.load %arg3[%c0_17, %c4, %c0_18] : memref<2x5x256xf32, #tpu.memory_space<vmem>>, vector<2x1x256xf32>
    tpu.vector_store %arg3[%c0_17, %c4, %c0_18], %41 {strides = array<i32>} : memref<2x5x256xf32, #tpu.memory_space<vmem>>, vector<2x1x256xf32>,
    return
  }
  func.func @transform_0(%arg0: i32) -> (i32, i32, i32) {
    %c0_i32 = arith.constant 0 : i32
    %c0_i32_0 = arith.constant 0 : i32
    %c0_i32_1 = arith.constant 0 : i32
    return %arg0, %c0_i32, %c0_i32_0 : i32, i32, i32
  }
  func.func @transform_1(%arg0: i32) -> (i32, i32, i32) {
    %c0_i32 = arith.constant 0 : i32
    %c0_i32_0 = arith.constant 0 : i32
    %c0_i32_1 = arith.constant 0 : i32
    return %arg0, %c0_i32, %c0_i32_0 : i32, i32, i32
  }
  func.func @transform_2(%arg0: i32) -> (i32, i32, i32) {
    %c0_i32 = arith.constant 0 : i32
    %c0_i32_0 = arith.constant 0 : i32
    %c0_i32_1 = arith.constant 0 : i32
    return %arg0, %c0_i32, %c0_i32_0 : i32, i32, i32
  }
}

</mosaic_0001>

<llo_original>
// kernel: tpu_custom_call.1
$region0: #{tpu_custom_call.1}
  #allocation0 [shape = 'u32[]', space=smem, size = 0x4, offset = 0x4, fixed_abs, tag = 'smem constant byte address 0x4 - core index']
  #allocation1 [shape = 'u32[72,128]{1,0:T(1,128)}', space=vmem, size = 0x9000, scoped, tag = 'internal scratch']
  %s0 = inlined_call_operand.hbm [shape: f32[2,4,256], index: 0, kind: input, shape index: {}]
  %s1 = inlined_call_operand.hbm [shape: f32[2,1,256], index: 1, kind: input, shape index: {}]
  %s2 = inlined_call_operand.vmem [shape: f32[2,5,256], index: 2, kind: output, shape index: {}]
  %s3 = sld [smem:[#allocation0]]
  $region26: #{tpu_custom_call.1} parent=0
    _
  %s5 = ssub.s32 1, %s3
  %s6 = scalar_select 0, %s5, %s3
  $region1: #{tpu_custom_call.1} parent=0
    #allocation2 [shape = 'u8[8192]{0}', space=vmem, size = 0x2000, scoped, tag = 'input window, operand 0, single buffered']
    #allocation3 [shape = 's32[1]{0}', space=sflag, size = 0x4, scoped, tag = 'scoped memory for tpu_custom_call.1']
    #allocation4 [shape = 'u8[2048]{0}', space=vmem, size = 0x800, scoped, tag = 'input window, operand 1, single buffered']
    #allocation5 [shape = 's32[1]{0}', space=sflag, size = 0x4, scoped, tag = 'scoped memory for tpu_custom_call.1']
    %7 = vsyncpa [#allocation3], 0
    %8 = vsyncpa [#allocation5], 0
    // Predicated region
    $region2: #{tpu_custom_call.1} parent=1 // pred_check
      _
    $region3: #{tpu_custom_call.1} parent=1 // pred_check_branch
      %10 = sbr.rel (0) target = $region5
    $region4: #{tpu_custom_call.1} parent=1 // pred_region
      %12 = vsyncadd [#allocation3], 0
      %s13 = sshll.u32 %s0, 4
      %s14 = int_to_ptr.hbm [resolvable:$true] %s13
      %s15 = sshll.u32 [#allocation2], 4
      %s16 = int_to_ptr.vmem [resolvable:$true] %s15
      %21 = dma.hbm_to_vmem [thread:$0]  %s14, 256, %s16, [#allocation3], 128, 128, 8
    $region5: #{tpu_custom_call.1} parent=1 // pred_fallthru
      _
    // Predicated region
    $region6: #{tpu_custom_call.1} parent=1 // pred_check
      _
    $region7: #{tpu_custom_call.1} parent=1 // pred_check_branch
      %23 = sbr.rel (0) target = $region9
    $region8: #{tpu_custom_call.1} parent=1 // pred_region
      %25 = vsyncadd [#allocation5], 0
      %s26 = sshll.u32 %s1, 4
      %s27 = int_to_ptr.hbm [resolvable:$true] %s26
      %s28 = sshll.u32 [#allocation4], 4
      %s29 = int_to_ptr.vmem [resolvable:$true] %s28
      %34 = dma.hbm_to_vmem [thread:$0]  %s27, 64, %s29, [#allocation5], 32, 32, 2
    $region9: #{tpu_custom_call.1} parent=1 // pred_fallthru
      _
    // Predicated region
    $region10: #{tpu_custom_call.1} parent=1 // pred_check
      _
    $region11: #{tpu_custom_call.1} parent=1 // pred_check_branch
      %36 = sbr.rel (0) target = $region13
    $region12: #{tpu_custom_call.1} parent=1 // pred_region
      %38 = dma.done [#allocation3], 256
    $region13: #{tpu_custom_call.1} parent=1 // pred_fallthru
      _
    // Predicated region
    $region14: #{tpu_custom_call.1} parent=1 // pred_check
      _
    $region15: #{tpu_custom_call.1} parent=1 // pred_check_branch
      %40 = sbr.rel (0) target = $region17
    $region16: #{tpu_custom_call.1} parent=1 // pred_region
      %42 = dma.done [#allocation5], 64
    $region17: #{tpu_custom_call.1} parent=1 // pred_fallthru
      _
    %v43 = vld [vmem:[#allocation2] sm:$0xff]
    %v44 = vld [vmem:[#allocation2 + $0x8] sm:$0xff]
    %v45 = vld [vmem:[#allocation4] sm:$0x3]
    %v46 = vld [vmem:[#allocation4 + $0x2] sm:$0x3]
    %v47 = vmul.f32 %v43, 0.2989
    %v48 = vmul.f32 %v44, 0.2989
    %v49 = vmul.f32 %v43, 0.587
    %v50 = vmul.f32 %v44, 0.587
    %v53 = vrot.slane %v49, 5
    %v54 = vrot.slane %v53, 4
    %v55 = vrot.slane %v50, 5
    %v56 = vrot.slane %v55, 4
    %v59 = vadd.f32 %v47, %v54
    %v60 = vadd.f32 %v48, %v56
    %v61 = vmul.f32 %v43, 0.114
    %v62 = vmul.f32 %v44, 0.114
    %v65 = vrot.slane %v61, 6
    %v66 = vrot.slane %v65, 4
    %v67 = vrot.slane %v62, 6
    %v68 = vrot.slane %v67, 4
    %v71 = vadd.f32 %v59, %v66
    %v72 = vadd.f32 %v60, %v68
    %v75 = vrot.slane %v43, 7
    %v76 = vrot.slane %v75, 4
    %v77 = vrot.slane %v44, 7
    %v78 = vrot.slane %v77, 4
    %v81 = vsub.f32 %v71, %v76
    %v82 = vsub.f32 %v72, %v78
    %v83 = vmax.f32 %v81, 0.0
    %v84 = vmax.f32 %v82, 0.0
    %v87 = vperm.slane %v83, 0
    %v88 = vperm.slane %v83, 4
    %v89 = vperm.slane %v84, 0
    %v90 = vperm.slane %v84, 4
    %vm91 = vcmask 1041409
    %v92 = vsel %vm91, %v89, %v87
    %v93 = vsel %vm91, %v90, %v88
    %vm96 = vcmask 1041408
    %v97 = vsel %vm96, %v92, inf
    %v98 = vsel %vm96, %v93, inf
    %v99 = vmin.f32 %v97, %v98
    %100 = vmin.xlane.f32.xlu0 %v99
    %v101 = vpop.xlane.xlu0 %100
    %v102 = vsel %vm96, %v92, -inf
    %v103 = vsel %vm96, %v93, -inf
    %v104 = vmax.f32 %v102, %v103
    %105 = vmax.xlane.f32.xlu0 %v104
    %v106 = vpop.xlane.xlu0 %105
    %v107 = vsub.f32 %v106, %v101
    %v108 = vadd.f32 %v107, 1e-06
    %v109 = vrcp.pop %v108
    %v110 = vmul.f32 %v108, %v109
    %v111 = vsub.f32 1.0, %v110
    %v112 = vmul.f32 %v109, %v111
    %v113 = vadd.f32 %v109, %v112
    %vm114 = vweird.f32 %v108
    %vm115 = vweird.f32 %v109
    %vm116 = vmor %vm114, %vm115
    %v117 = vsel %vm116, %v109, %v113
    %v118 = vand.u32 2147483647, %v108
    %vm119 = vcmp.eq.f32.partialorder %v118, 8.507059e+37
    %v120 = vand.u32 %v108, 2147483648
    %v121 = vor.u32 1.1754944e-38, %v120
    %v122 = vsel %vm119, %v121, %v117
    %v123 = vmul.f32 0.5, %v122
    %v126 = vunpack.c.l.s4 839922192
    %v127 = vunpack.c.0.s8 %v126
    %v128 = vperm.slane %v101, %v127
    %v129 = vrot.slane %v128, 1
    %v132 = vsub.f32 %v83, %v128
    %v133 = vsub.f32 %v84, %v129
    %v136 = vperm.slane %v132, 0
    %v137 = vperm.slane %v132, 4
    %v138 = vperm.slane %v133, 0
    %v139 = vperm.slane %v133, 4
    %v140 = vsel %vm91, %v138, %v136
    %v141 = vsel %vm91, %v139, %v137
    %v144 = vmul.f32 %v123, %v140
    %v145 = vmul.f32 %v123, %v141
    %v148 = vrot.slane %v145, 7
    %vm149 = vcmask 1040384
    %v150 = vsel %vm149, %v144, %v148
    %v151 = vsel %vm91, %v144, %v148
    %v152 = vrot.slane %v151, 1
    %v155 = vadd.f32 %v45, %v150
    %v156 = vadd.f32 %v46, %v152
    %v157 = vmax.f32 %v155, 0.0
    %v158 = vmax.f32 %v156, 0.0
    %v159 = vmin.f32 %v157, 1.0
    %v160 = vmin.f32 %v158, 1.0
    %161 = vst [vmem:[#allocation1] ss:$2 sm:$0xff] %v43
    %v162 = vld.sshfl [vmem:[#allocation1] sm:$0xff pattern:$0x75316420]
    %v163 = vld.sshfl [vmem:[#allocation1 + $0x8] sm:$0xff pattern:$0x75316420]
    %s164 = scalar_lea.vmem [#allocation1], 16
    %165 = vst [vmem:[%s164] ss:$2 sm:$0xff] %v44
    %v166 = vld.sshfl [vmem:[#allocation1 + $0x10] sm:$0xff pattern:$0x75316420]
    %v167 = vld.sshfl [vmem:[#allocation1 + $0x18] sm:$0xff pattern:$0x75316420]
    %172 = vst [vmem:[%s2] sm:$0xf] %v162
    %173 = vst [vmem:[%s2 + $0x8] sm:$0xf] %v163
    %174 = vst [vmem:[%s2 + $0x10] sm:$0xf] %v166
    %175 = vst [vmem:[%s2 + $0x18] sm:$0xf] %v167
    %v176 = vlaneseq
    %vm177 = vcmp.ge.s32.totalorder %v176, 0
    %vm178 = vcmp.lt.s32.totalorder %v176, 256
    %vm179 = vmand %vm177, %vm178
    %s180 = scalar_lea.vmem %s2, 4
    %181 = vst.msk [vmem:[%s180] ss:$8 sm:$0x3] %vm179, %v159
    %182 = vst.msk [vmem:[%s180] ss:$8 sm:$0x0] %vm179, %v159
    %s183 = scalar_lea.vmem %s2, 20
    %184 = vst.msk [vmem:[%s183] ss:$8 sm:$0x3] %vm179, %v160
    %185 = vst.msk [vmem:[%s183] ss:$8 sm:$0x0] %vm179, %v160
    // Predicated region
    $region18: #{tpu_custom_call.1} parent=1 // pred_check
      _
    $region19: #{tpu_custom_call.1} parent=1 // pred_check_branch
      %187 = sbr.rel (0) target = $region21
    $region20: #{tpu_custom_call.1} parent=1 // pred_region
      _
    $region21: #{tpu_custom_call.1} parent=1 // pred_fallthru
      _
    // Predicated region
    $region22: #{tpu_custom_call.1} parent=1 // pred_check
      _
    $region23: #{tpu_custom_call.1} parent=1 // pred_check_branch
      %189 = sbr.rel (0) target = $region25
    $region24: #{tpu_custom_call.1} parent=1 // pred_region
      _
    $region25: #{tpu_custom_call.1} parent=1 // pred_fallthru
      _
    %190 = vsyncpa [#allocation3], 1
    %191 = vsyncpa [#allocation5], 1

</llo_original>
